<compile_context>
chip_gen: v6e
topology: v6e:2x2x1
jax: 0.10.0
libtpu: 0.0.40
codegen_flags: <defaults>
</compile_context>

<pallas_src>
import jax
import jax.numpy as jnp
from jax.experimental import pallas as pl
from jax.experimental.pallas import tpu as pltpu

VECTOR_SIZE = 50

_ROWS = 128      # packed rows per vocab entry (one full lane-group of sublanes)
_HALF = 64       # center half [0:64), context half [64:128)
_CB_ROW = 126    # center bias row
_XB_ROW = 127    # context bias row


def glove_kernel(slab_ref, out_ref):
    # slab_ref : [128, block_b]  (batch on lanes, packed features on sublanes)
    # out_ref  : [1, block_b]
    slab = slab_ref[...].astype(jnp.float32)            # single full-tile load
    # rows D..63 of the center half are zero, so the bias rows (local 62/63 of
    # the context half) contribute nothing to the dot product.
    prod = slab[0:_HALF, :] * slab[_HALF:_ROWS, :]       # full-lane VPU mul
    dot = jnp.sum(prod, axis=0, keepdims=True)           # [1, block_b]
    bias = slab[_CB_ROW:_CB_ROW + 1, :] + slab[_XB_ROW:_XB_ROW + 1, :]
    out_ref[...] = dot + bias


def _choose_block_b(batch, block_b):
    """Pick a lane-dense batch block size.

    - multiple of 128 (lane width), or the full batch when batch is small;
    - as large as requested (default 8192) to amortize the ~0.35 us per-step
      pipeline overhead of this HBM-bound kernel;
    - clamped so the "parallel" grid has >= 2 steps (keeps both v7x
      TensorCores busy) whenever that still leaves blocks >= 512 lanes.
    """
    if batch < 2 * 128:
        return batch                                   # tiny: one full-extent block
    bb = max(128, (block_b // 128) * 128)
    two_step = -(-(-(-batch // 2)) // 128) * 128       # round_up_128(ceil(B/2))
    bb = min(bb, max(512, two_step))
    if bb >= batch:
        return batch                                   # one full-extent block
    return bb


def glove_forward(packed_table_t, center_ids, context_ids, *, block_b=8192):
    """Pallas implementation of Glove.forward.

    packed_table_t: [128, vocab] fused, pre-transposed parameter table from
                    pack_glove_params().
    center_ids, context_ids: int32 [batch].  (context_ids unused, matching the
    original PyTorch module.)  Returns float32 [batch, 1].
    """
    del context_ids  # unused in the reference forward (reproduced faithfully)

    # Single lane-axis gather -> lane-dense [128, B] slab (no transposes,
    # no concatenate).  This is the only XLA glue left outside the kernel.
    slab = jnp.take(packed_table_t, center_ids, axis=1)   # [128, B]

    rows, B = slab.shape
    assert rows == _ROWS
    bb = _choose_block_b(B, block_b)
    grid = (pl.cdiv(B, bb),)

    itemsize = jnp.dtype(slab.dtype).itemsize
    cost = pl.CostEstimate(
        flops=2 * _HALF * B + 2 * B,
        transcendentals=0,
        bytes_accessed=_ROWS * B * itemsize + B * 4,
    )

    out_t = pl.pallas_call(
        glove_kernel,
        out_shape=jax.ShapeDtypeStruct((1, B), jnp.float32),
        grid_spec=pltpu.PrefetchScalarGridSpec(
            num_scalar_prefetch=0,
            grid=grid,
            in_specs=[pl.BlockSpec((_ROWS, bb), lambda i: (0, i))],
            out_specs=pl.BlockSpec((1, bb), lambda i: (0, i)),
        ),
        compiler_params=pltpu.CompilerParams(
            dimension_semantics=("parallel",)
        ),
        cost_estimate=cost,
    )(slab)

    return out_t.reshape(B, 1)


def init_glove_params(vocab_size, vector_size, key):
    """Deterministic parameter init matching nn.Embedding shapes (N(0,1) like torch)."""
    k1, k2, k3, k4 = jax.random.split(key, 4)
    return {
        "center_weight": jax.random.normal(k1, (vocab_size, vector_size), jnp.float32),
        "center_biase": jax.random.normal(k2, (vocab_size, 1), jnp.float32),
        "context_weight": jax.random.normal(k3, (vocab_size, vector_size), jnp.float32),
        "context_biase": jax.random.normal(k4, (vocab_size, 1), jnp.float32),
    }


def pack_glove_params(params, dtype=jnp.float32):
    """One-time packing of the four tables into a fused [128, vocab] table.

    Row layout (per vocab entry, before the transpose):
      [0:D) center_weight, [64:64+D) context_weight, 126 center_bias,
      127 context_bias, everything else zero.  Requires D <= 62.
    Pass dtype=jnp.bfloat16 to halve HBM traffic (kernel accumulates in f32).
    """
    cw = params["center_weight"]
    xw = params["context_weight"]
    cb = params["center_biase"]
    xb = params["context_biase"]
    vocab, d = cw.shape
    assert d <= _HALF - 2, "packed layout requires vector_size <= 62"
    fused = jnp.zeros((vocab, _ROWS), jnp.float32)
    fused = fused.at[:, 0:d].set(cw)
    fused = fused.at[:, _HALF:_HALF + d].set(xw)
    fused = fused.at[:, _CB_ROW].set(cb[:, 0])
    fused = fused.at[:, _XB_ROW].set(xb[:, 0])
    return fused.T.astype(dtype)                       # [128, vocab]


def glove_reference(params, center_ids, context_ids):
    """Pure-JAX reference mirroring the PyTorch forward exactly."""
    del context_ids
    cw = params["center_weight"][center_ids]
    cb = params["center_biase"][center_ids]
    xw = params["context_weight"][center_ids]
    xb = params["context_biase"][center_ids]
    return jnp.sum(cw * xw, axis=1, keepdims=True) + cb + xb


if __name__ == "__main__":
    vocab_size = 100
    batch = 300          # not a multiple of 128: exercises the partial last block

    key = jax.random.PRNGKey(0)
    pkey, ikey1, ikey2 = jax.random.split(key, 3)

    params = init_glove_params(vocab_size, VECTOR_SIZE, pkey)
    packed_t = pack_glove_params(params)               # [128, vocab], f32
    center_ids = jax.random.randint(ikey1, (batch,), 0, vocab_size, dtype=jnp.int32)
    context_ids = jax.random.randint(ikey2, (batch,), 0, vocab_size, dtype=jnp.int32)

    ref = glove_reference(params, center_ids, context_ids)

    # Small blocks -> 3-step parallel grid with a partial (44-lane) tail block.
    out = glove_forward(params if False else packed_t, center_ids, context_ids, block_b=128)
    out = jax.block_until_ready(out)
    assert out.shape == (batch, 1), out.shape
    assert jnp.allclose(out, ref, atol=1e-4, rtol=1e-5), (out, ref)

    # Default (large) block size -> single full-extent block at this tiny batch.
    out2 = jax.block_until_ready(glove_forward(packed_t, center_ids, context_ids))
    assert jnp.allclose(out2, ref, atol=1e-4, rtol=1e-5), (out2, ref)

    print("KERNEL_OK")
</pallas_src>

<mosaic_0001>
module attributes {stable_mosaic.version = 11 : i64} {
  func.func @glove_kernel(%arg0: i32, %arg1: memref<128x128xf32, #tpu.memory_space<vmem>>, %arg2: memref<1x128xf32, #tpu.memory_space<vmem>>) attributes {dimension_semantics = [#tpu.dimension_semantics<parallel>], iteration_bounds = array<i64: 3>, scalar_prefetch = 0 : i64, scratch_operands = 0 : i64, tpu.core_type = #tpu.core_type<tc>, window_params = [{transform_indices = @transform_0, window_bounds = array<i64: 128, 128>}, {transform_indices = @transform_1, window_bounds = array<i64: 1, 128>}]} {
    %c0 = arith.constant 0 : index
    %c0_0 = arith.constant 0 : index
    %0 = vector.load %arg1[%c0, %c0_0] : memref<128x128xf32, #tpu.memory_space<vmem>>, vector<128x128xf32>
    %1 = vector.extract_strided_slice %0 {offsets = [0, 0], sizes = [64, 128], strides = [1, 1]} : vector<128x128xf32> to vector<64x128xf32>
    %2 = vector.extract_strided_slice %0 {offsets = [64, 0], sizes = [64, 128], strides = [1, 1]} : vector<128x128xf32> to vector<64x128xf32>
    %3 = arith.mulf %1, %2 : vector<64x128xf32>
    %cst = arith.constant dense<0.000000e+00> : vector<128xf32>
    %4 = vector.multi_reduction <add>, %3, %cst [0] : vector<64x128xf32> to vector<128xf32>
    %5 = vector.shape_cast %4 : vector<128xf32> to vector<1x128xf32>
    %6 = vector.extract_strided_slice %0 {offsets = [126, 0], sizes = [1, 128], strides = [1, 1]} : vector<128x128xf32> to vector<1x128xf32>
    %7 = vector.extract_strided_slice %0 {offsets = [127, 0], sizes = [1, 128], strides = [1, 1]} : vector<128x128xf32> to vector<1x128xf32>
    %8 = arith.addf %6, %7 : vector<1x128xf32>
    %9 = arith.addf %5, %8 : vector<1x128xf32>
    %c0_1 = arith.constant 0 : index
    %c0_2 = arith.constant 0 : index
    %10 = vector.load %arg2[%c0_1, %c0_2] : memref<1x128xf32, #tpu.memory_space<vmem>>, vector<1x128xf32>
    tpu.vector_store %arg2[%c0_1, %c0_2], %9 {strides = array<i32>} : memref<1x128xf32, #tpu.memory_space<vmem>>, vector<1x128xf32>,
    return
  }
  func.func @transform_0(%arg0: i32) -> (i32, i32) {
    %c0_i32 = arith.constant 0 : i32
    %c0_i32_0 = arith.constant 0 : i32
    return %c0_i32, %arg0 : i32, i32
  }
  func.func @transform_1(%arg0: i32) -> (i32, i32) {
    %c0_i32 = arith.constant 0 : i32
    %c0_i32_0 = arith.constant 0 : i32
    return %c0_i32, %arg0 : i32, i32
  }
}

</mosaic_0001>

<llo_original>
// kernel: tpu_custom_call.1
$region0: #{tpu_custom_call.1}
  #allocation0 [shape = 'u32[]', space=smem, size = 0x4, offset = 0x4, fixed_abs, tag = 'smem constant byte address 0x4 - core index']
  #allocation1 [shape = 'u32[144,128]{1,0:T(1,128)}', space=vmem, size = 0x12000, scoped, tag = 'internal scratch']
  %s0 = inlined_call_operand.vmem [shape: f32[128,300], index: 0, kind: input, shape index: {}]
  %s1 = inlined_call_operand.hbm [shape: f32[1,300], index: 1, kind: output, shape index: {}]
  %s2 = sld [smem:[#allocation0]]
  $region75: #{tpu_custom_call.1} parent=0
    _
  %s4 = ssub.s32 1, %s2
  %s5 = scalar_select 0, %s4, %s2
  $region1: #{tpu_custom_call.1} parent=0
    #allocation2 [shape = 'u8[131072]{0}', space=vmem, size = 0x20000, scoped, tag = 'input window, operand 0']
    #allocation3 [shape = 'u8[1024]{0}', space=vmem, size = 0x400, scoped, tag = 'output window, operand 0']
    #allocation4 [shape = 's32[2]{0}', space=sflag, size = 0x8, scoped, tag = 'scoped memory for tpu_custom_call.1']
    %6 = vsyncpa [#allocation4], 0
    %s7 = scalar_lea.sflag [#allocation4], 1
    %8 = vsyncpa %s7, 0
    loop: start=0, step=1, limit=5
    $region2: #{tpu_custom_call.1} parent=1 // loop_pre_header
      _
    $region3: #{tpu_custom_call.1} parent=1 // loop_header
      %s10 = sphi 0, %s14
      %p11 = scmp.ge.s32.totalorder %s10, 5
      %s20 = sphi 0, %s22
      %s23 = sphi 0, %s20
      %s24 = sphi 0, %s23
      %s40 = sphi 0, %s24
      %s46 = sphi 0, %s48
      %s49 = sphi 0, %s46
      %s50 = sphi 0, %s49
      %s66 = sphi 0, %s50
    $region4: #{tpu_custom_call.1} parent=1 // loop_header_branch
      %13 = sbr.rel (%p11) target = $region8
    $region5: #{tpu_custom_call.1} parent=1 // loop_body
      %s15 = ssub.s32 %s10, 1
      %s16 = ssub.s32 %s10, 2
      %s17 = sadd.s32 %s10, 1
      %s18 = ssub.s32 %s10, %s17
      %p19 = scmp.eq.s32.totalorder %s18, 0
      %s21 = sadd.s32 %s20, 1
      %s22 = scalar_select %p19, %s20, %s21
      %p25 = pneg %p19
      %p26 = scmp.eq.s32.totalorder %s10, 2
      %p27 = por %p25, %p26
      %p28 = scmp.ne.s32.totalorder %s20, %s23
      %p29 = scmp.eq.s32.totalorder %s10, 0
      %p30 = por %p28, %p29
      %p31 = scmp.ne.s32.totalorder %s20, %s23
      %p32 = scmp.eq.s32.totalorder %s15, 2
      %p33 = por %p31, %p32
      %p34 = scmp.ne.s32.totalorder %s23, %s24
      %p35 = scmp.eq.s32.totalorder %s15, 0
      %p36 = por %p34, %p35
      %p37 = scmp.ne.s32.totalorder %s23, %s24
      %p38 = scmp.eq.s32.totalorder %s16, 2
      %p39 = por %p37, %p38
      %p41 = scmp.ne.s32.totalorder %s24, %s40
      %p42 = scmp.eq.s32.totalorder %s16, 0
      %p43 = por %p41, %p42
      %s44 = ssub.s32 %s10, %s17
      %p45 = scmp.eq.s32.totalorder %s44, 0
      %s47 = sadd.s32 %s46, 1
      %s48 = scalar_select %p45, %s46, %s47
      %p51 = pneg %p45
      %p52 = scmp.eq.s32.totalorder %s10, 2
      %p53 = por %p51, %p52
      %p54 = scmp.ne.s32.totalorder %s46, %s49
      %p55 = scmp.eq.s32.totalorder %s10, 0
      %p56 = por %p54, %p55
      %p57 = scmp.ne.s32.totalorder %s46, %s49
      %p58 = scmp.eq.s32.totalorder %s15, 2
      %p59 = por %p57, %p58
      %p60 = scmp.ne.s32.totalorder %s49, %s50
      %p61 = scmp.eq.s32.totalorder %s15, 0
      %p62 = por %p60, %p61
      %p63 = scmp.ne.s32.totalorder %s49, %s50
      %p64 = scmp.eq.s32.totalorder %s16, 2
      %p65 = por %p63, %p64
      %p67 = scmp.ne.s32.totalorder %s50, %s66
      %p68 = scmp.eq.s32.totalorder %s16, 0
      %p69 = por %p67, %p68
      %p70 = scmp.le.s32.totalorder 1, %s10
      %p71 = scmp.lt.s32.totalorder %s10, 4
      %p72 = pnand %p70, %p71
      %p73 = pneg %p72
      // Predicated region
      $region9: #{tpu_custom_call.1} parent=5 // pred_check
        _
      $region10: #{tpu_custom_call.1} parent=5 // pred_check_branch
        %75 = sbr.rel (%p72) target = $region12
      $region11: #{tpu_custom_call.1} parent=5 // pred_region
        %s76 = ssub.s32 %s10, 1
      $region12: #{tpu_custom_call.1} parent=5 // pred_fallthru
        _
      %p77 = scmp.lt.s32.totalorder %s10, 3
      // Predicated region
      $region13: #{tpu_custom_call.1} parent=5 // pred_check
        %p78 = pneg %p77
      $region14: #{tpu_custom_call.1} parent=5 // pred_check_branch
        %80 = sbr.rel (%p78) target = $region16
      $region15: #{tpu_custom_call.1} parent=5 // pred_region
        // Predicated region
        $region17: #{tpu_custom_call.1} parent=15 // pred_check
          %p81 = pneg %p30
        $region18: #{tpu_custom_call.1} parent=15 // pred_check_branch
          %83 = sbr.rel (%p81) target = $region20
        $region19: #{tpu_custom_call.1} parent=15 // pred_region
          %s84 = sand.u32 %s20, 1
          %s85 = sand.u32 %s20, 1
          %s86 = smul.addr %s85, 128
          %s87 = scalar_lea.vmem [#allocation2], %s86
          %s88 = smul.addr %s10, 8
          %s89 = scalar_lea.vmem %s0, %s88
          // Predicated region
          $region21: #{tpu_custom_call.1} parent=19 // pred_check
            _
          $region22: #{tpu_custom_call.1} parent=19 // pred_check_branch
            %91 = sbr.rel (0) target = $region24
          $region23: #{tpu_custom_call.1} parent=19 // pred_region
            // Predicated region
            $region25: #{tpu_custom_call.1} parent=23 // pred_check
              _
            $region26: #{tpu_custom_call.1} parent=23 // pred_check_branch
              %93 = sbr.rel (0) target = $region28
            $region27: #{tpu_custom_call.1} parent=23 // pred_region
              // Predicated region
              $region40: #{tpu_custom_call.1} parent=27 // pred_check
                _
              $region41: #{tpu_custom_call.1} parent=27 // pred_check_branch
                %139 = sbr.rel (0) target = $region43
              $region42: #{tpu_custom_call.1} parent=27 // pred_region
                loop: start=0, step=1, limit=1
                $region44: #{tpu_custom_call.1} parent=42 // loop_pre_header
                  _
                $region45: #{tpu_custom_call.1} parent=42 // loop_header
                  %s141 = sphi 0, %s145
                  %p142 = scmp.ge.s32.totalorder %s141, 1
                  %s146 = sphi %s89, %s89
                  %s147 = sphi %s87, %s87
                $region46: #{tpu_custom_call.1} parent=42 // loop_header_branch
                  %144 = sbr.rel (%p142) target = $region50
                $region47: #{tpu_custom_call.1} parent=42 // loop_body
                  %v148 = vld [vmem:[%s146] sm:$0xff]
                  %149 = vst [vmem:[%s147] sm:$0xff] %v148
                  %v150 = vld [vmem:[%s146 + $0x18] sm:$0xff]
                  %151 = vst [vmem:[%s147 + $0x8] sm:$0xff] %v150
                  %v152 = vld [vmem:[%s146 + $0x30] sm:$0xff]
                  %153 = vst [vmem:[%s147 + $0x10] sm:$0xff] %v152
                  %v154 = vld [vmem:[%s146 + $0x48] sm:$0xff]
                  %155 = vst [vmem:[%s147 + $0x18] sm:$0xff] %v154
                  %v156 = vld [vmem:[%s146 + $0x60] sm:$0xff]
                  %157 = vst [vmem:[%s147 + $0x20] sm:$0xff] %v156
                  %v158 = vld [vmem:[%s146 + $0x78] sm:$0xff]
                  %159 = vst [vmem:[%s147 + $0x28] sm:$0xff] %v158
                  %v160 = vld [vmem:[%s146 + $0x90] sm:$0xff]
                  %161 = vst [vmem:[%s147 + $0x30] sm:$0xff] %v160
                  %v162 = vld [vmem:[%s146 + $0xa8] sm:$0xff]
                  %163 = vst [vmem:[%s147 + $0x38] sm:$0xff] %v162
                  %v164 = vld [vmem:[%s146 + $0xc0] sm:$0xff]
                  %165 = vst [vmem:[%s147 + $0x40] sm:$0xff] %v164
                  %v166 = vld [vmem:[%s146 + $0xd8] sm:$0xff]
                  %167 = vst [vmem:[%s147 + $0x48] sm:$0xff] %v166
                  %v168 = vld [vmem:[%s146 + $0xf0] sm:$0xff]
                  %169 = vst [vmem:[%s147 + $0x50] sm:$0xff] %v168
                  %v170 = vld [vmem:[%s146 + $0x108] sm:$0xff]
                  %171 = vst [vmem:[%s147 + $0x58] sm:$0xff] %v170
                  %v172 = vld [vmem:[%s146 + $0x120] sm:$0xff]
                  %173 = vst [vmem:[%s147 + $0x60] sm:$0xff] %v172
                  %v174 = vld [vmem:[%s146 + $0x138] sm:$0xff]
                  %175 = vst [vmem:[%s147 + $0x68] sm:$0xff] %v174
                  %v176 = vld [vmem:[%s146 + $0x150] sm:$0xff]
                  %177 = vst [vmem:[%s147 + $0x70] sm:$0xff] %v176
                  %v178 = vld [vmem:[%s146 + $0x168] sm:$0xff]
                  %179 = vst [vmem:[%s147 + $0x78] sm:$0xff] %v178
                $region48: #{tpu_custom_call.1} parent=42 // loop_footer
                  %s145 = sadd.s32 1, %s141
                $region49: #{tpu_custom_call.1} parent=42 // loop_footer_branch
                  %140 = sbr.rel target = $region45
                $region50: #{tpu_custom_call.1} parent=42 // loop_exit
                  _
              $region43: #{tpu_custom_call.1} parent=27 // pred_fallthru
                _
              // Predicated region
              $region51: #{tpu_custom_call.1} parent=27 // pred_check
                _
              $region52: #{tpu_custom_call.1} parent=27 // pred_check_branch
                %181 = sbr.rel target = $region54
              $region53: #{tpu_custom_call.1} parent=27 // pred_region
                _
              $region54: #{tpu_custom_call.1} parent=27 // pred_fallthru
                _
            $region28: #{tpu_custom_call.1} parent=23 // pred_fallthru
              _
            // Predicated region
            $region29: #{tpu_custom_call.1} parent=23 // pred_check
              _
            $region30: #{tpu_custom_call.1} parent=23 // pred_check_branch
              %95 = sbr.rel target = $region32
            $region31: #{tpu_custom_call.1} parent=23 // pred_region
              %s97 = ssub.s32 256, 1
              loop: start=0, step=1, limit=1
              $region33: #{tpu_custom_call.1} parent=31 // loop_pre_header
                _
              $region34: #{tpu_custom_call.1} parent=31 // loop_header
                %s99 = sphi 0, %s103
                %p100 = scmp.ge.s32.totalorder %s99, 1
                %s104 = sphi %s89, %s89
                %s105 = sphi %s87, %s87
              $region35: #{tpu_custom_call.1} parent=31 // loop_header_branch
                %102 = sbr.rel (%p100) target = $region39
              $region36: #{tpu_custom_call.1} parent=31 // loop_body
                %v106 = vld [vmem:[%s104] sm:%s97]
                %107 = vst [vmem:[%s105] sm:%s97] %v106
                %v108 = vld [vmem:[%s104 + $0x18] sm:%s97]
                %109 = vst [vmem:[%s105 + $0x8] sm:%s97] %v108
                %v110 = vld [vmem:[%s104 + $0x30] sm:%s97]
                %111 = vst [vmem:[%s105 + $0x10] sm:%s97] %v110
                %v112 = vld [vmem:[%s104 + $0x48] sm:%s97]
                %113 = vst [vmem:[%s105 + $0x18] sm:%s97] %v112
                %v114 = vld [vmem:[%s104 + $0x60] sm:%s97]
                %115 = vst [vmem:[%s105 + $0x20] sm:%s97] %v114
                %v116 = vld [vmem:[%s104 + $0x78] sm:%s97]
                %117 = vst [vmem:[%s105 + $0x28] sm:%s97] %v116
                %v118 = vld [vmem:[%s104 + $0x90] sm:%s97]
                %119 = vst [vmem:[%s105 + $0x30] sm:%s97] %v118
                %v120 = vld [vmem:[%s104 + $0xa8] sm:%s97]
                %121 = vst [vmem:[%s105 + $0x38] sm:%s97] %v120
                %v122 = vld [vmem:[%s104 + $0xc0] sm:%s97]
                %123 = vst [vmem:[%s105 + $0x40] sm:%s97] %v122
                %v124 = vld [vmem:[%s104 + $0xd8] sm:%s97]
                %125 = vst [vmem:[%s105 + $0x48] sm:%s97] %v124
                %v126 = vld [vmem:[%s104 + $0xf0] sm:%s97]
                %127 = vst [vmem:[%s105 + $0x50] sm:%s97] %v126
                %v128 = vld [vmem:[%s104 + $0x108] sm:%s97]
                %129 = vst [vmem:[%s105 + $0x58] sm:%s97] %v128
                %v130 = vld [vmem:[%s104 + $0x120] sm:%s97]
                %131 = vst [vmem:[%s105 + $0x60] sm:%s97] %v130
                %v132 = vld [vmem:[%s104 + $0x138] sm:%s97]
                %133 = vst [vmem:[%s105 + $0x68] sm:%s97] %v132
                %v134 = vld [vmem:[%s104 + $0x150] sm:%s97]
                %135 = vst [vmem:[%s105 + $0x70] sm:%s97] %v134
                %v136 = vld [vmem:[%s104 + $0x168] sm:%s97]
                %137 = vst [vmem:[%s105 + $0x78] sm:%s97] %v136
              $region37: #{tpu_custom_call.1} parent=31 // loop_footer
                %s103 = sadd.s32 1, %s99
              $region38: #{tpu_custom_call.1} parent=31 // loop_footer_branch
                %98 = sbr.rel target = $region34
              $region39: #{tpu_custom_call.1} parent=31 // loop_exit
                _
            $region32: #{tpu_custom_call.1} parent=23 // pred_fallthru
              _
          $region24: #{tpu_custom_call.1} parent=19 // pred_fallthru
            _
          %182 = vnop
        $region20: #{tpu_custom_call.1} parent=15 // pred_fallthru
          _
      $region16: #{tpu_custom_call.1} parent=5 // pred_fallthru
        _
      %p183 = scmp.le.s32.totalorder 1, %s10
      %p184 = scmp.lt.s32.totalorder %s10, 4
      %p185 = pnand %p183, %p184
      %p186 = pneg %p185
      // Predicated region
      $region55: #{tpu_custom_call.1} parent=5 // pred_check
        _
      $region56: #{tpu_custom_call.1} parent=5 // pred_check_branch
        %188 = sbr.rel (%p185) target = $region58
      $region57: #{tpu_custom_call.1} parent=5 // pred_region
        %s189 = ssub.s32 %s10, 1
        %s190 = sand.u32 %s23, 1
        %s191 = sand.u32 %s23, 1
        %s192 = smul.addr %s191, 128
        %s193 = scalar_lea.vmem [#allocation2], %s192
        // Predicated region
        $region59: #{tpu_custom_call.1} parent=57 // pred_check
          %p194 = pneg %p36
        $region60: #{tpu_custom_call.1} parent=57 // pred_check_branch
          %196 = sbr.rel (%p194) target = $region62
        $region61: #{tpu_custom_call.1} parent=57 // pred_region
          _
        $region62: #{tpu_custom_call.1} parent=57 // pred_fallthru
          _
        %s197 = sand.u32 %s23, 1
        %s198 = sand.u32 %s23, 1
        %s199 = smul.addr %s198, 128
        %s200 = scalar_lea.vmem [#allocation2], %s199
        %p201 = pneg %p36
        %p202 = pneg %p33
        %p203 = pneg %p62
        %p204 = pneg %p59
        %s205 = sand.u32 %s49, 1
        %s206 = scalar_lea.sflag [#allocation4], %s205
        %s207 = sand.u32 %s49, 1
        %s208 = scalar_lea.vmem [#allocation3], %s207
        %v209 = vld [vmem:[%s193] sm:$0xff]
        %v210 = vld [vmem:[%s193 + $0x8] sm:$0xff]
        %v211 = vld [vmem:[%s193 + $0x10] sm:$0xff]
        %v212 = vld [vmem:[%s193 + $0x18] sm:$0xff]
        %v213 = vld [vmem:[%s193 + $0x20] sm:$0xff]
        %v214 = vld [vmem:[%s193 + $0x28] sm:$0xff]
        %v215 = vld [vmem:[%s193 + $0x30] sm:$0xff]
        %v216 = vld [vmem:[%s193 + $0x38] sm:$0xff]
        %v217 = vld [vmem:[%s193 + $0x40] sm:$0xff]
        %v218 = vld [vmem:[%s193 + $0x48] sm:$0xff]
        %v219 = vld [vmem:[%s193 + $0x50] sm:$0xff]
        %v220 = vld [vmem:[%s193 + $0x58] sm:$0xff]
        %v221 = vld [vmem:[%s193 + $0x60] sm:$0xff]
        %v222 = vld [vmem:[%s193 + $0x68] sm:$0xff]
        %v223 = vld [vmem:[%s193 + $0x70] sm:$0xff]
        %v224 = vld [vmem:[%s193 + $0x78] sm:$0xff]
        %v225 = vmul.f32 %v209, %v217
        %v226 = vmul.f32 %v210, %v218
        %v227 = vmul.f32 %v211, %v219
        %v228 = vmul.f32 %v212, %v220
        %v229 = vmul.f32 %v213, %v221
        %v230 = vmul.f32 %v214, %v222
        %v231 = vmul.f32 %v215, %v223
        %v232 = vmul.f32 %v216, %v224
        %v233 = vadd.f32 %v225, %v226
        %v234 = vadd.f32 %v233, %v227
        %v235 = vadd.f32 %v234, %v228
        %v236 = vadd.f32 %v235, %v229
        %v237 = vadd.f32 %v236, %v230
        %v238 = vadd.f32 %v237, %v231
        %v239 = vadd.f32 %v238, %v232
        %v240 = vrot.slane %v239, 4
        %v241 = vadd.f32 %v239, %v240
        %v242 = vrot.slane %v241, 2
        %v243 = vadd.f32 %v241, %v242
        %v244 = vrot.slane %v243, 1
        %v245 = vadd.f32 %v243, %v244
        %v247 = vrot.slane %v224, 1
        %v249 = vadd.f32 %v224, %v247
        %v250 = vadd.f32 %v245, %v249
        %251 = vst [vmem:[%s208 - $0x6] sm:$0x40] %v250
        %s252 = sand.u32 %s49, 1
        %s253 = scalar_lea.sflag [#allocation4], %s252
        %s254 = sand.u32 %s49, 1
        %s255 = scalar_lea.vmem [#allocation3], %s254
        // Predicated region
        $region63: #{tpu_custom_call.1} parent=57 // pred_check
          %p256 = pneg %p59
        $region64: #{tpu_custom_call.1} parent=57 // pred_check_branch
          %258 = sbr.rel (%p256) target = $region66
        $region65: #{tpu_custom_call.1} parent=57 // pred_region
          %s260 = ssub.s32 16, 16
          %261 = vsyncadd %s253, %s260
          %s262 = smul.addr %s15, 16
          %s263 = scalar_lea.hbm %s1, %s262
          %s265 = sshll.u32 %s255, 4
          %s266 = int_to_ptr.vmem [resolvable:$true] %s265
          %268 = dma.vmem_to_hbm [thread:$0]  %s266, 16, %s263, %s253
        $region66: #{tpu_custom_call.1} parent=57 // pred_fallthru
          _
      $region58: #{tpu_custom_call.1} parent=5 // pred_fallthru
        _
      %p269 = scmp.le.s32.totalorder 2, %s10
      // Predicated region
      $region67: #{tpu_custom_call.1} parent=5 // pred_check
        %p270 = pneg %p269
      $region68: #{tpu_custom_call.1} parent=5 // pred_check_branch
        %272 = sbr.rel (%p270) target = $region70
      $region69: #{tpu_custom_call.1} parent=5 // pred_region
        %s273 = ssub.s32 %s10, 2
        // Predicated region
        $region71: #{tpu_custom_call.1} parent=69 // pred_check
          %p274 = pneg %p65
        $region72: #{tpu_custom_call.1} parent=69 // pred_check_branch
          %276 = sbr.rel (%p274) target = $region74
        $region73: #{tpu_custom_call.1} parent=69 // pred_region
          %s277 = sand.u32 %s50, 1
          %s278 = scalar_lea.sflag [#allocation4], %s277
          %s279 = sand.u32 %s50, 1
          %s280 = scalar_lea.vmem [#allocation3], %s279
          %281 = dma.done %s278, 16
        $region74: #{tpu_custom_call.1} parent=69 // pred_fallthru
          _
      $region70: #{tpu_custom_call.1} parent=5 // pred_fallthru
        _
    $region6: #{tpu_custom_call.1} parent=1 // loop_footer
      %s14 = sadd.s32 1, %s10
    $region7: #{tpu_custom_call.1} parent=1 // loop_footer_branch
      %9 = sbr.rel target = $region3
    $region8: #{tpu_custom_call.1} parent=1 // loop_exit
      _
    %282 = vsyncpa [#allocation4], 1
    %s283 = scalar_lea.sflag [#allocation4], 1
    %284 = vsyncpa %s283, 1

</llo_original>
